<compile_context>
chip_gen: v7x
topology: tpu7x:2x2x1
jax: 0.10.0
libtpu: 0.0.40
codegen_flags: <defaults>
</compile_context>

<pallas_src>
import functools

import jax
import jax.numpy as jnp
from jax.experimental import pallas as pl
from jax.experimental.pallas import tpu as pltpu

LN_EPS = 1e-7                       # DebertaV2Config default layer_norm_eps
_INV_SQRT2 = 0.7071067811865476
_TANH_C0 = 0.7978845608028654       # sqrt(2/pi)
_TANH_C1 = 0.044715

_SINGLE_BUFFER_OK = [True]          # flips to False if pl.Buffered(1) is rejected


def rtd_head_kernel(h_ref, ctx_ref, wd_ref, bd_ref, wch_ref, cb_ref, out_ref,
                    *, approximate_gelu):
    bB, tS, H = h_ref.shape
    M = bB * tS

    # CLS-state add (statistics always in f32 regardless of input dtype),
    # then flatten (bB, tS, H) -> (M, H) so the MXU sees one tall M tile.
    h = h_ref[...].astype(jnp.float32)                       # (bB, tS, H)
    ctx = ctx_ref[...].astype(jnp.float32)                   # (bB, 1, H)
    x = (h + ctx).reshape(M, H)                              # (M, H)

    # LayerNorm over the hidden axis.  gamma/beta were folded into wd/bd by
    # the wrapper, so only center + rsqrt-scale remain here.
    mean = jnp.mean(x, axis=-1, keepdims=True)
    xc = x - mean
    var = jnp.mean(jnp.square(xc), axis=-1, keepdims=True)
    xn = xc * jax.lax.rsqrt(var + LN_EPS)                    # (M, H)

    # dense H->E on the MXU (bf16 operands by default, f32 accumulation);
    # wd already carries gamma, bd already carries beta @ W + dense_b.
    y = jnp.dot(xn.astype(wd_ref.dtype), wd_ref[...],
                preferred_element_type=jnp.float32) + bd_ref[...]    # (M, E)

    # GELU fused with the E->1 classifier.  wch == 0.5 * cls_w, so
    #   sum(gelu(y) * cls_w) == sum((y * wch) * (1 + erf(y / sqrt2)))
    # saving one full (M, E) multiply pass versus materializing gelu(y).
    if approximate_gelu:
        inner = _TANH_C0 * (y + _TANH_C1 * y * y * y)
        act = 1.0 + jnp.tanh(inner)               # tanh -> EUP slot
    else:
        act = 1.0 + jax.lax.erf(y * _INV_SQRT2)   # exact HF ACT2FN["gelu"]
    lg = jnp.sum((y * wch_ref[...]) * act, axis=-1, keepdims=True) + cb_ref[0]

    # Lane-dense store: one (1, M) row per grid step (small XLU transpose).
    out_ref[0, 0] = jnp.transpose(lg).astype(out_ref.dtype)
    # TODO(synk): evaluate a bf16 epilogue (cast y right after the MXU
    # accumulate) on v6e/v7x packed VPU once validated against the accuracy
    # budget; not useful on v5e (no bf16 VPU/EUP).


def _round_up(x, m):
    return ((x + m - 1) // m) * m


def _physical_vmem_bytes():
    try:
        return int(pltpu.get_tpu_info().vmem_capacity_bytes)
    except Exception:
        return 64 * 1024 * 1024      # assume the smallest (v7x per-core) part


def _choose_tiles(B, S):
    """Pick (batches per block bB, sequence tile tS, padded sequence S_pad).

    bB > 1 is only used when the whole (padded) sequence fits in one tile, so
    the CLS broadcast, the (bB, tS, H) -> (bB*tS, H) flatten, and the final
    output reshape stay trivially correct.
    """
    # Larger tiles amortize the ~0.35us/step overhead on 128 MiB VMEM parts
    # (v5e/v6e); v7x's 64 MiB per-core VMEM needs the f32 intermediates
    # (~(2H+2E)*M*4 bytes) bounded tighter.
    s_cap = 1024 if _physical_vmem_bytes() >= 96 * 1024 * 1024 else 512

    if S <= s_cap:
        tS = _round_up(S, 8)
        S_pad = tS
    else:
        S_pad = _round_up(S, 128)
        tS = 128
        for cand in (1024, 512, 256):
            if cand <= s_cap and S_pad % cand == 0:
                tS = cand
                break
    n_s = S_pad // tS

    bB = 1
    if n_s == 1:
        target_rows = 512            # keep all MXU tiles fed / amortize steps
        want = max(1, target_rows // max(tS, 1))
        for cand in range(min(B, want), 0, -1):
            # keep >=2 grid steps when possible (v7x has 2 TensorCores)
            if B % cand == 0 and (B // cand) * n_s >= 2:
                bB = cand
                break

    # Guarantee >=2 grid steps when possible so both v7x TensorCores get work.
    if (B // bB) * n_s < 2 and bB == 1 and tS % 16 == 0 and tS >= 16:
        tS //= 2
    return bB, tS, S_pad


def _vmem_limit_bytes(bB, tS, H, E, in_itemsize, w_itemsize):
    m = bB * tS
    blocks = 2 * (bB * tS * H * in_itemsize      # hidden slab (double-buffered)
                  + bB * H * in_itemsize         # CLS rows
                  + m * 4)                       # output row
    # invariants counted double-buffered (worst case if Buffered(1) falls back)
    blocks += 2 * (H * E * w_itemsize + 2 * E * 4)
    interm = 2 * m * H * 4 + 2 * m * E * 4       # LN temporaries + dense/GELU acts
    need = blocks + interm
    phys = _physical_vmem_bytes()
    cap = (3 * phys) // 4                        # ~48 MiB on v7x, ~96 MiB on v5e/v6e
    return int(min(max(2 * need, 32 * 1024 * 1024), cap))


def deberta_v3_rtd_head(hidden_states, params, *, matmul_dtype=jnp.bfloat16,
                        approximate_gelu=False):
    B, S, H = hidden_states.shape
    E = params["dense_w"].shape[1]

    bB, tS, S_pad = _choose_tiles(B, S)
    gb, gs = B // bB, S_pad // tS
    m_blk = bB * tS

    ctx = hidden_states[:, 0:1, :]                           # (B, 1, H) CLS rows
    hs = hidden_states
    if S_pad != S:
        # Per-token math: padded rows are harmless and sliced off at the end.
        hs = jnp.pad(hidden_states, ((0, 0), (0, S_pad - S), (0, 0)))

    # Fold LayerNorm affine into the dense layer (f32 math, then cast):
    #   (xn*gamma + beta) @ W + b == xn @ (gamma[:,None]*W) + (beta @ W + b)
    gamma = params["ln_gamma"].astype(jnp.float32)
    beta = params["ln_beta"].astype(jnp.float32)
    w_f32 = params["dense_w"].astype(jnp.float32)            # (H, E)
    wd = (gamma[:, None] * w_f32).astype(matmul_dtype)       # fused MXU weight
    bd = (beta @ w_f32
          + params["dense_b"].astype(jnp.float32)).reshape(1, E)
    wch = (0.5 * params["cls_w"].astype(jnp.float32)).reshape(1, E)  # 0.5 folded
    cb = params["cls_b"].reshape(1).astype(jnp.float32)      # scalar bias -> SMEM

    vmem_limit = _vmem_limit_bytes(
        bB, tS, H, E,
        jnp.dtype(hidden_states.dtype).itemsize,
        jnp.dtype(matmul_dtype).itemsize)

    kernel = functools.partial(rtd_head_kernel, approximate_gelu=approximate_gelu)

    def call(single_buffer_invariants):
        inv_kwargs = ({"pipeline_mode": pl.Buffered(1)}
                      if single_buffer_invariants else {})
        in_specs = [
            pl.BlockSpec((bB, tS, H), lambda b, s: (b, s, 0)),         # hidden slab
            pl.BlockSpec((bB, 1, H), lambda b, s: (b, 0, 0)),          # CLS rows
            pl.BlockSpec((H, E), lambda b, s: (0, 0), **inv_kwargs),   # fused dense W
            pl.BlockSpec((1, E), lambda b, s: (0, 0), **inv_kwargs),   # fused dense b
            pl.BlockSpec((1, E), lambda b, s: (0, 0), **inv_kwargs),   # 0.5 * cls W
            pl.BlockSpec(memory_space=pltpu.MemorySpace.SMEM),         # cls bias
        ]
        return pl.pallas_call(
            kernel,
            out_shape=jax.ShapeDtypeStruct((gb, gs, 1, m_blk), jnp.float32),
            grid_spec=pltpu.PrefetchScalarGridSpec(
                num_scalar_prefetch=0,
                grid=(gb, gs),
                in_specs=in_specs,
                out_specs=pl.BlockSpec((1, 1, 1, m_blk),
                                       lambda b, s: (b, s, 0, 0)),
            ),
            compiler_params=pltpu.CompilerParams(
                dimension_semantics=("parallel", "parallel"),
                vmem_limit_bytes=vmem_limit),
        )(hs, ctx, wd, bd, wch, cb)

    if _SINGLE_BUFFER_OK[0]:
        try:
            out = call(True)
        except Exception:
            # pl.Buffered(1) not accepted on this build: fall back to default
            # double-buffering (only costs a little VMEM for the invariants).
            _SINGLE_BUFFER_OK[0] = False
            out = call(False)
    else:
        out = call(False)

    # (gb, gs, 1, bB*tS) is contiguous in (batch, token) order because bB > 1
    # only coexists with gs == 1 -> free reshape, then drop the seq padding.
    return out.reshape(B, S_pad)[:, :S]


def reference(hidden_states, params):
    """Pure-JAX (f32) reference mirroring the PyTorch forward."""
    hs = hidden_states.astype(jnp.float32)
    ctx = hs[:, 0:1, :]
    x = ctx + hs
    mean = jnp.mean(x, axis=-1, keepdims=True)
    var = jnp.mean(jnp.square(x - mean), axis=-1, keepdims=True)
    xn = (x - mean) / jnp.sqrt(var + LN_EPS)
    xn = xn * params["ln_gamma"] + params["ln_beta"]
    y = xn @ params["dense_w"] + params["dense_b"]
    y = jax.nn.gelu(y, approximate=False)
    return (y @ params["cls_w"] + params["cls_b"])[..., 0]


if __name__ == "__main__":
    B, S, H = 2, 8, 32        # batch, seq, hidden_size
    E = H                     # embedding_size defaults to hidden_size

    key = jax.random.PRNGKey(0)
    k_h, k_dw, k_db, k_g, k_b, k_cw, k_cb = jax.random.split(key, 7)

    hidden_states = jax.random.normal(k_h, (B, S, H), dtype=jnp.float32)

    params = {
        # nn.Linear(hidden_size, embedding_size): weight stored here as (H, E)
        "dense_w": jax.random.normal(k_dw, (H, E), dtype=jnp.float32) * 0.05,
        "dense_b": jax.random.normal(k_db, (E,), dtype=jnp.float32) * 0.05,
        # nn.LayerNorm(embedding_size)
        "ln_gamma": 1.0 + 0.1 * jax.random.normal(k_g, (H,), dtype=jnp.float32),
        "ln_beta": 0.1 * jax.random.normal(k_b, (H,), dtype=jnp.float32),
        # nn.Linear(embedding_size, 1)
        "cls_w": jax.random.normal(k_cw, (E, 1), dtype=jnp.float32) * 0.05,
        "cls_b": jax.random.normal(k_cb, (1,), dtype=jnp.float32) * 0.05,
    }

    ref = reference(hidden_states, params)

    # Exact-precision path (f32 matmul): tight numerical check.
    logits_f32 = jax.block_until_ready(
        deberta_v3_rtd_head(hidden_states, params, matmul_dtype=jnp.float32))
    # Fast path (bf16 MXU matmul, f32 accumulation): looser tolerance expected.
    logits = jax.block_until_ready(deberta_v3_rtd_head(hidden_states, params))

    assert logits.shape == (B, S), logits.shape
    assert jnp.allclose(logits_f32, ref, atol=1e-5, rtol=1e-5), (
        float(jnp.max(jnp.abs(logits_f32 - ref))))
    assert jnp.allclose(logits, ref, atol=2e-2, rtol=2e-2), (
        float(jnp.max(jnp.abs(logits - ref))))

    # Exercise the sequence-padding path (S not a multiple of 8).
    S2 = 11
    hs2 = jax.random.normal(k_h, (B, S2, H), dtype=jnp.float32)
    ref2 = reference(hs2, params)
    logits2 = jax.block_until_ready(
        deberta_v3_rtd_head(hs2, params, matmul_dtype=jnp.float32))
    assert logits2.shape == (B, S2), logits2.shape
    assert jnp.allclose(logits2, ref2, atol=1e-5, rtol=1e-5), (
        float(jnp.max(jnp.abs(logits2 - ref2))))

    print("KERNEL_OK")
</pallas_src>

<mosaic_0001>
module attributes {stable_mosaic.version = 11 : i64} {
  func.func @rtd_head_kernel(%arg0: i32, %arg1: i32, %arg2: memref<1x8x32xf32, #tpu.memory_space<vmem>>, %arg3: memref<1x1x32xf32, #tpu.memory_space<vmem>>, %arg4: memref<32x32xf32, #tpu.memory_space<vmem>>, %arg5: memref<1x32xf32, #tpu.memory_space<vmem>>, %arg6: memref<1x32xf32, #tpu.memory_space<vmem>>, %arg7: memref<1xf32, #tpu.memory_space<smem>>, %arg8: memref<1x1x1x8xf32, #tpu.memory_space<vmem>>) attributes {dimension_semantics = [#tpu.dimension_semantics<parallel>, #tpu.dimension_semantics<parallel>], iteration_bounds = array<i64: 2, 1>, scalar_prefetch = 0 : i64, scratch_operands = 0 : i64, tpu.core_type = #tpu.core_type<tc>, window_params = [{transform_indices = @transform_0, window_bounds = array<i64: 1, 8, 32>}, {transform_indices = @transform_1, window_bounds = array<i64: 1, 1, 32>}, {pipeline_mode = #tpu.pipeline_mode<synchronous>, transform_indices = @transform_2, window_bounds = array<i64: 32, 32>}, {pipeline_mode = #tpu.pipeline_mode<synchronous>, transform_indices = @transform_3, window_bounds = array<i64: 1, 32>}, {pipeline_mode = #tpu.pipeline_mode<synchronous>, transform_indices = @transform_4, window_bounds = array<i64: 1, 32>}, {transform_indices = @transform_5, window_bounds = array<i64: 1>}, {transform_indices = @transform_6, window_bounds = array<i64: 1, 1, 1, 8>}]} {
    %c0 = arith.constant 0 : index
    %c0_0 = arith.constant 0 : index
    %c0_1 = arith.constant 0 : index
    %0 = vector.load %arg2[%c0, %c0_0, %c0_1] : memref<1x8x32xf32, #tpu.memory_space<vmem>>, vector<1x8x32xf32>
    %c0_2 = arith.constant 0 : index
    %c0_3 = arith.constant 0 : index
    %c0_4 = arith.constant 0 : index
    %1 = vector.load %arg3[%c0_2, %c0_3, %c0_4] : memref<1x1x32xf32, #tpu.memory_space<vmem>>, vector<1x1x32xf32>
    %2 = vector.broadcast %1 : vector<1x1x32xf32> to vector<1x8x32xf32>
    %3 = arith.addf %0, %2 : vector<1x8x32xf32>
    %4 = vector.shape_cast %3 : vector<1x8x32xf32> to vector<8x32xf32>
    %cst = arith.constant dense<0.000000e+00> : vector<8xf32>
    %5 = vector.multi_reduction <add>, %4, %cst [1] : vector<8x32xf32> to vector<8xf32>
    %6 = vector.shape_cast %5 : vector<8xf32> to vector<8x1xf32>
    %cst_5 = arith.constant 3.200000e+01 : f32
    %7 = vector.broadcast %cst_5 : f32 to vector<8x1xf32>
    %8 = arith.divf %6, %7 : vector<8x1xf32>
    %9 = vector.broadcast %8 : vector<8x1xf32> to vector<8x32xf32>
    %10 = arith.subf %4, %9 : vector<8x32xf32>
    %11 = arith.mulf %10, %10 : vector<8x32xf32>
    %cst_6 = arith.constant dense<0.000000e+00> : vector<8xf32>
    %12 = vector.multi_reduction <add>, %11, %cst_6 [1] : vector<8x32xf32> to vector<8xf32>
    %13 = vector.shape_cast %12 : vector<8xf32> to vector<8x1xf32>
    %cst_7 = arith.constant 3.200000e+01 : f32
    %14 = vector.broadcast %cst_7 : f32 to vector<8x1xf32>
    %15 = arith.divf %13, %14 : vector<8x1xf32>
    %cst_8 = arith.constant 1.000000e-07 : f32
    %16 = vector.broadcast %cst_8 : f32 to vector<8x1xf32>
    %17 = arith.addf %15, %16 : vector<8x1xf32>
    %18 = math.rsqrt %17 : vector<8x1xf32>
    %19 = vector.broadcast %18 : vector<8x1xf32> to vector<8x32xf32>
    %20 = arith.mulf %10, %19 : vector<8x32xf32>
    %c0_9 = arith.constant 0 : index
    %c0_10 = arith.constant 0 : index
    %21 = vector.load %arg4[%c0_9, %c0_10] : memref<32x32xf32, #tpu.memory_space<vmem>>, vector<32x32xf32>
    %cst_11 = arith.constant dense<0.000000e+00> : vector<8x32xf32>
    %22 = tpu.matmul %20, %21, %cst_11 {dimension_numbers = #tpu.dot_dimension_numbers<[1], [0], [0], [1], [0, 0, 1, 1], [], []>} : vector<8x32xf32>, vector<32x32xf32>, vector<8x32xf32> -> vector<8x32xf32>
    %c0_12 = arith.constant 0 : index
    %c0_13 = arith.constant 0 : index
    %23 = vector.load %arg5[%c0_12, %c0_13] : memref<1x32xf32, #tpu.memory_space<vmem>>, vector<1x32xf32>
    %24 = vector.broadcast %23 : vector<1x32xf32> to vector<8x32xf32>
    %25 = arith.addf %22, %24 : vector<8x32xf32>
    %cst_14 = arith.constant 0.707106769 : f32
    %26 = vector.broadcast %cst_14 : f32 to vector<8x32xf32>
    %27 = arith.mulf %25, %26 : vector<8x32xf32>
    %28 = math.erf %27 : vector<8x32xf32>
    %cst_15 = arith.constant 1.000000e+00 : f32
    %29 = vector.broadcast %cst_15 : f32 to vector<8x32xf32>
    %30 = arith.addf %29, %28 : vector<8x32xf32>
    %c0_16 = arith.constant 0 : index
    %c0_17 = arith.constant 0 : index
    %31 = vector.load %arg6[%c0_16, %c0_17] : memref<1x32xf32, #tpu.memory_space<vmem>>, vector<1x32xf32>
    %32 = vector.broadcast %31 : vector<1x32xf32> to vector<8x32xf32>
    %33 = arith.mulf %25, %32 : vector<8x32xf32>
    %34 = arith.mulf %33, %30 : vector<8x32xf32>
    %cst_18 = arith.constant dense<0.000000e+00> : vector<8xf32>
    %35 = vector.multi_reduction <add>, %34, %cst_18 [1] : vector<8x32xf32> to vector<8xf32>
    %36 = vector.shape_cast %35 : vector<8xf32> to vector<8x1xf32>
    %c0_19 = arith.constant 0 : index
    %37 = memref.load %arg7[%c0_19] : memref<1xf32, #tpu.memory_space<smem>>
    %38 = vector.broadcast %37 : f32 to vector<8x1xf32>
    %39 = arith.addf %36, %38 : vector<8x1xf32>
    %40 = tpu.transpose %39, [1, 0] : vector<8x1xf32> -> vector<1x8xf32>
    %c0_20 = arith.constant 0 : index
    %c0_21 = arith.constant 0 : index
    %c0_22 = arith.constant 0 : index
    %c0_23 = arith.constant 0 : index
    %41 = vector.load %arg8[%c0_20, %c0_21, %c0_22, %c0_23] : memref<1x1x1x8xf32, #tpu.memory_space<vmem>>, vector<1x1x1x8xf32>
    %42 = vector.shape_cast %41 : vector<1x1x1x8xf32> to vector<1x8xf32>
    %43 = vector.shape_cast %40 : vector<1x8xf32> to vector<1x1x1x8xf32>
    tpu.vector_store %arg8[%c0_20, %c0_21, %c0_22, %c0_23], %43 {strides = array<i32>} : memref<1x1x1x8xf32, #tpu.memory_space<vmem>>, vector<1x1x1x8xf32>,
    return
  }
  func.func @transform_0(%arg0: i32, %arg1: i32) -> (i32, i32, i32) {
    %c0_i32 = arith.constant 0 : i32
    %c0_i32_0 = arith.constant 0 : i32
    return %arg0, %arg1, %c0_i32 : i32, i32, i32
  }
  func.func @transform_1(%arg0: i32, %arg1: i32) -> (i32, i32, i32) {
    %c0_i32 = arith.constant 0 : i32
    %c0_i32_0 = arith.constant 0 : i32
    %c0_i32_1 = arith.constant 0 : i32
    return %arg0, %c0_i32, %c0_i32_0 : i32, i32, i32
  }
  func.func @transform_2(%arg0: i32, %arg1: i32) -> (i32, i32) {
    %c0_i32 = arith.constant 0 : i32
    %c0_i32_0 = arith.constant 0 : i32
    %c0_i32_1 = arith.constant 0 : i32
    return %c0_i32, %c0_i32_0 : i32, i32
  }
  func.func @transform_3(%arg0: i32, %arg1: i32) -> (i32, i32) {
    %c0_i32 = arith.constant 0 : i32
    %c0_i32_0 = arith.constant 0 : i32
    %c0_i32_1 = arith.constant 0 : i32
    return %c0_i32, %c0_i32_0 : i32, i32
  }
  func.func @transform_4(%arg0: i32, %arg1: i32) -> (i32, i32) {
    %c0_i32 = arith.constant 0 : i32
    %c0_i32_0 = arith.constant 0 : i32
    %c0_i32_1 = arith.constant 0 : i32
    return %c0_i32, %c0_i32_0 : i32, i32
  }
  func.func @transform_5(%arg0: i32, %arg1: i32) -> i32 {
    %c0_i32 = arith.constant 0 : i32
    %c0_i32_0 = arith.constant 0 : i32
    return %c0_i32 : i32
  }
  func.func @transform_6(%arg0: i32, %arg1: i32) -> (i32, i32, i32, i32) {
    %c0_i32 = arith.constant 0 : i32
    %c0_i32_0 = arith.constant 0 : i32
    %c0_i32_1 = arith.constant 0 : i32
    return %arg0, %arg1, %c0_i32, %c0_i32_0 : i32, i32, i32, i32
  }
}

module attributes {stable_mosaic.version = 11 : i64} {
  func.func @rtd_head_kernel(%arg0: i32, %arg1: i32, %arg2: memref<1x8x32xf32, #tpu.memory_space<vmem>>, %arg3: memref<1x1x32xf32, #tpu.memory_space<vmem>>, %arg4: memref<32x32xf32, #tpu.memory_space<vmem>>, %arg5: memref<1x32xf32, #tpu.memory_space<vmem>>, %arg6: memref<1x32xf32, #tpu.memory_space<vmem>>, %arg7: memref<1xf32, #tpu.memory_space<smem>>, %arg8: memref<1x1x1x8xf32, #tpu.memory_space<vmem>>) attributes {dimension_semantics = [#tpu.dimension_semantics<parallel>, #tpu.dimension_semantics<parallel>], iteration_bounds = array<i64: 2, 1>, scalar_prefetch = 0 : i64, scratch_operands = 0 : i64, tpu.core_type = #tpu.core_type<tc>, window_params = [{transform_indices = @transform_0, window_bounds = array<i64: 1, 8, 32>}, {transform_indices = @transform_1, window_bounds = array<i64: 1, 1, 32>}, {pipeline_mode = #tpu.pipeline_mode<synchronous>, transform_indices = @transform_2, window_bounds = array<i64: 32, 32>}, {pipeline_mode = #tpu.pipeline_mode<synchronous>, transform_indices = @transform_3, window_bounds = array<i64: 1, 32>}, {pipeline_mode = #tpu.pipeline_mode<synchronous>, transform_indices = @transform_4, window_bounds = array<i64: 1, 32>}, {transform_indices = @transform_5, window_bounds = array<i64: 1>}, {transform_indices = @transform_6, window_bounds = array<i64: 1, 1, 1, 8>}]} {
    %c0 = arith.constant 0 : index
    %c0_0 = arith.constant 0 : index
    %c0_1 = arith.constant 0 : index
    %0 = vector.load %arg2[%c0, %c0_0, %c0_1] : memref<1x8x32xf32, #tpu.memory_space<vmem>>, vector<1x8x32xf32>
    %c0_2 = arith.constant 0 : index
    %c0_3 = arith.constant 0 : index
    %c0_4 = arith.constant 0 : index
    %1 = vector.load %arg3[%c0_2, %c0_3, %c0_4] : memref<1x1x32xf32, #tpu.memory_space<vmem>>, vector<1x1x32xf32>
    %2 = vector.broadcast %1 : vector<1x1x32xf32> to vector<1x8x32xf32>
    %3 = arith.addf %0, %2 : vector<1x8x32xf32>
    %4 = vector.shape_cast %3 : vector<1x8x32xf32> to vector<8x32xf32>
    %cst = arith.constant dense<0.000000e+00> : vector<8xf32>
    %5 = vector.multi_reduction <add>, %4, %cst [1] : vector<8x32xf32> to vector<8xf32>
    %6 = vector.shape_cast %5 : vector<8xf32> to vector<8x1xf32>
    %cst_5 = arith.constant 3.200000e+01 : f32
    %7 = vector.broadcast %cst_5 : f32 to vector<8x1xf32>
    %8 = arith.divf %6, %7 : vector<8x1xf32>
    %9 = vector.broadcast %8 : vector<8x1xf32> to vector<8x32xf32>
    %10 = arith.subf %4, %9 : vector<8x32xf32>
    %11 = arith.mulf %10, %10 : vector<8x32xf32>
    %cst_6 = arith.constant dense<0.000000e+00> : vector<8xf32>
    %12 = vector.multi_reduction <add>, %11, %cst_6 [1] : vector<8x32xf32> to vector<8xf32>
    %13 = vector.shape_cast %12 : vector<8xf32> to vector<8x1xf32>
    %cst_7 = arith.constant 3.200000e+01 : f32
    %14 = vector.broadcast %cst_7 : f32 to vector<8x1xf32>
    %15 = arith.divf %13, %14 : vector<8x1xf32>
    %cst_8 = arith.constant 1.000000e-07 : f32
    %16 = vector.broadcast %cst_8 : f32 to vector<8x1xf32>
    %17 = arith.addf %15, %16 : vector<8x1xf32>
    %18 = math.rsqrt %17 : vector<8x1xf32>
    %19 = vector.broadcast %18 : vector<8x1xf32> to vector<8x32xf32>
    %20 = arith.mulf %10, %19 : vector<8x32xf32>
    %c0_9 = arith.constant 0 : index
    %c0_10 = arith.constant 0 : index
    %21 = vector.load %arg4[%c0_9, %c0_10] : memref<32x32xf32, #tpu.memory_space<vmem>>, vector<32x32xf32>
    %cst_11 = arith.constant dense<0.000000e+00> : vector<8x32xf32>
    %22 = tpu.matmul %20, %21, %cst_11 {dimension_numbers = #tpu.dot_dimension_numbers<[1], [0], [0], [1], [0, 0, 1, 1], [], []>} : vector<8x32xf32>, vector<32x32xf32>, vector<8x32xf32> -> vector<8x32xf32>
    %c0_12 = arith.constant 0 : index
    %c0_13 = arith.constant 0 : index
    %23 = vector.load %arg5[%c0_12, %c0_13] : memref<1x32xf32, #tpu.memory_space<vmem>>, vector<1x32xf32>
    %24 = vector.broadcast %23 : vector<1x32xf32> to vector<8x32xf32>
    %25 = arith.addf %22, %24 : vector<8x32xf32>
    %cst_14 = arith.constant 0.707106769 : f32
    %26 = vector.broadcast %cst_14 : f32 to vector<8x32xf32>
    %27 = arith.mulf %25, %26 : vector<8x32xf32>
    %28 = math.erf %27 : vector<8x32xf32>
    %cst_15 = arith.constant 1.000000e+00 : f32
    %29 = vector.broadcast %cst_15 : f32 to vector<8x32xf32>
    %30 = arith.addf %29, %28 : vector<8x32xf32>
    %c0_16 = arith.constant 0 : index
    %c0_17 = arith.constant 0 : index
    %31 = vector.load %arg6[%c0_16, %c0_17] : memref<1x32xf32, #tpu.memory_space<vmem>>, vector<1x32xf32>
    %32 = vector.broadcast %31 : vector<1x32xf32> to vector<8x32xf32>
    %33 = arith.mulf %25, %32 : vector<8x32xf32>
    %34 = arith.mulf %33, %30 : vector<8x32xf32>
    %cst_18 = arith.constant dense<0.000000e+00> : vector<8xf32>
    %35 = vector.multi_reduction <add>, %34, %cst_18 [1] : vector<8x32xf32> to vector<8xf32>
    %36 = vector.shape_cast %35 : vector<8xf32> to vector<8x1xf32>
    %c0_19 = arith.constant 0 : index
    %37 = memref.load %arg7[%c0_19] : memref<1xf32, #tpu.memory_space<smem>>
    %38 = vector.broadcast %37 : f32 to vector<8x1xf32>
    %39 = arith.addf %36, %38 : vector<8x1xf32>
    %40 = tpu.transpose %39, [1, 0] : vector<8x1xf32> -> vector<1x8xf32>
    %c0_20 = arith.constant 0 : index
    %c0_21 = arith.constant 0 : index
    %c0_22 = arith.constant 0 : index
    %c0_23 = arith.constant 0 : index
    %41 = vector.load %arg8[%c0_20, %c0_21, %c0_22, %c0_23] : memref<1x1x1x8xf32, #tpu.memory_space<vmem>>, vector<1x1x1x8xf32>
    %42 = vector.shape_cast %41 : vector<1x1x1x8xf32> to vector<1x8xf32>
    %43 = vector.shape_cast %40 : vector<1x8xf32> to vector<1x1x1x8xf32>
    tpu.vector_store %arg8[%c0_20, %c0_21, %c0_22, %c0_23], %43 {strides = array<i32>} : memref<1x1x1x8xf32, #tpu.memory_space<vmem>>, vector<1x1x1x8xf32>,
    return
  }
  func.func @transform_0(%arg0: i32, %arg1: i32) -> (i32, i32, i32) {
    %c0_i32 = arith.constant 0 : i32
    %c0_i32_0 = arith.constant 0 : i32
    return %arg0, %arg1, %c0_i32 : i32, i32, i32
  }
  func.func @transform_1(%arg0: i32, %arg1: i32) -> (i32, i32, i32) {
    %c0_i32 = arith.constant 0 : i32
    %c0_i32_0 = arith.constant 0 : i32
    %c0_i32_1 = arith.constant 0 : i32
    return %arg0, %c0_i32, %c0_i32_0 : i32, i32, i32
  }
  func.func @transform_2(%arg0: i32, %arg1: i32) -> (i32, i32) {
    %c0_i32 = arith.constant 0 : i32
    %c0_i32_0 = arith.constant 0 : i32
    %c0_i32_1 = arith.constant 0 : i32
    return %c0_i32, %c0_i32_0 : i32, i32
  }
  func.func @transform_3(%arg0: i32, %arg1: i32) -> (i32, i32) {
    %c0_i32 = arith.constant 0 : i32
    %c0_i32_0 = arith.constant 0 : i32
    %c0_i32_1 = arith.constant 0 : i32
    return %c0_i32, %c0_i32_0 : i32, i32
  }
  func.func @transform_4(%arg0: i32, %arg1: i32) -> (i32, i32) {
    %c0_i32 = arith.constant 0 : i32
    %c0_i32_0 = arith.constant 0 : i32
    %c0_i32_1 = arith.constant 0 : i32
    return %c0_i32, %c0_i32_0 : i32, i32
  }
  func.func @transform_5(%arg0: i32, %arg1: i32) -> i32 {
    %c0_i32 = arith.constant 0 : i32
    %c0_i32_0 = arith.constant 0 : i32
    return %c0_i32 : i32
  }
  func.func @transform_6(%arg0: i32, %arg1: i32) -> (i32, i32, i32, i32) {
    %c0_i32 = arith.constant 0 : i32
    %c0_i32_0 = arith.constant 0 : i32
    %c0_i32_1 = arith.constant 0 : i32
    return %arg0, %arg1, %c0_i32, %c0_i32_0 : i32, i32, i32, i32
  }
}

</mosaic_0001>

<llo_original>
// kernel: tpu_custom_call.1
$region0: #{tpu_custom_call.1}
  #allocation0 [shape = 'u32[]', space=smem, size = 0x4, offset = 0x4, fixed_abs, tag = 'smem constant byte address 0x4 - core index']
  #allocation1 [shape = 'u32[144,128]{1,0:T(1,128)}', space=vmem, size = 0x12000, scoped, tag = 'internal scratch']
  #allocation2 [shape = 'f32[1]{0:T(128)S(6)}', space=smem, size = 0x200, scoped, tag = 'scoped memory for tpu_custom_call.1']
  %s0 = inlined_call_operand.hbm [shape: f32[2,8,32], index: 0, kind: input, shape index: {}]
  %s1 = inlined_call_operand.vmem [shape: f32[2,1,32], index: 1, kind: input, shape index: {}]
  %s2 = inlined_call_operand.hbm [shape: f32[32,32], index: 2, kind: input, shape index: {}]
  %s3 = inlined_call_operand.vmem [shape: f32[1,32], index: 3, kind: input, shape index: {}]
  %s4 = inlined_call_operand.vmem [shape: f32[1,32], index: 4, kind: input, shape index: {}]
  %s5 = inlined_call_operand.<no memory space> [shape: f32[1], index: 5, kind: input, shape index: {}]
  %s6 = inlined_call_operand.hbm [shape: f32[2,1,1,8], index: 6, kind: output, shape index: {}]
  %s7 = sld [smem:[#allocation0]]
  $region65: #{tpu_custom_call.1} parent=0
    _
  %s9 = ssub.s32 1, %s7
  %s10 = scalar_select 0, %s9, %s7
  %11 = sst [smem:[#allocation2]] %s5
  $region1: #{tpu_custom_call.1} parent=0
    #allocation3 [shape = 'u8[8192]{0}', space=vmem, size = 0x2000, scoped, tag = 'input window, operand 0']
    #allocation4 [shape = 's32[2]{0}', space=sflag, size = 0x8, scoped, tag = 'scoped memory for tpu_custom_call.1']
    #allocation5 [shape = 's32[2]{0}', space=sflag, size = 0x8, scoped, tag = 'scoped memory for tpu_custom_call.1']
    #allocation6 [shape = 'u8[16384]{0}', space=vmem, size = 0x4000, scoped, tag = 'input window, operand 2, single buffered']
    #allocation7 [shape = 's32[1]{0}', space=sflag, size = 0x4, scoped, tag = 'scoped memory for tpu_custom_call.1']
    #allocation8 [shape = 'u8[1024]{0}', space=vmem, size = 0x400, scoped, tag = 'output window, operand 0']
    %12 = vsyncpa [#allocation4], 0
    %s13 = scalar_lea.sflag [#allocation4], 1
    %14 = vsyncpa %s13, 0
    %15 = vsyncpa [#allocation7], 0
    %16 = vsyncpa [#allocation5], 0
    %s17 = scalar_lea.sflag [#allocation5], 1
    %18 = vsyncpa %s17, 0
    loop: start=0, step=1, limit=4
    $region2: #{tpu_custom_call.1} parent=1 // loop_pre_header
      _
    $region3: #{tpu_custom_call.1} parent=1 // loop_header
      %s20 = sphi 0, %s24
      %p21 = scmp.ge.s32.totalorder %s20, 4
      %s27 = sphi 0, %s39
      %s28 = sphi 0, %s35
      %s29 = sphi 0, %s27
      %s30 = sphi 0, %s28
      %s31 = sphi 0, %s29
      %s32 = sphi 0, %s30
      %s44 = sphi 0, %s46
      %s47 = sphi 0, %s44
      %s48 = sphi 0, %s47
      %s64 = sphi 0, %s48
      %s70 = sphi 0, %s72
      %s73 = sphi 0, %s70
      %s74 = sphi 0, %s73
      %s90 = sphi 0, %s74
      %s94 = sphi 0, %s94
      %s96 = sphi 0, %s94
      %s97 = sphi 0, %s96
      %s111 = sphi 0, %s97
      %s115 = sphi 0, %s115
      %s117 = sphi 0, %s115
      %s118 = sphi 0, %s117
      %s132 = sphi 0, %s118
      %s136 = sphi 0, %s136
      %s138 = sphi 0, %s136
      %s139 = sphi 0, %s138
      %s153 = sphi 0, %s139
      %s157 = sphi 0, %s157
      %s159 = sphi 0, %s157
      %s160 = sphi 0, %s159
      %s174 = sphi 0, %s160
      %s182 = sphi 0, %s184
      %s185 = sphi 0, %s182
      %s186 = sphi 0, %s185
      %s202 = sphi 0, %s186
    $region4: #{tpu_custom_call.1} parent=1 // loop_header_branch
      %23 = sbr.rel (%p21) target = $region8
    $region5: #{tpu_custom_call.1} parent=1 // loop_body
      %s25 = ssub.s32 %s20, 1
      %s26 = ssub.s32 %s20, 2
      %s33 = sadd.s32 1, %s28
      %p34 = scmp.ge.s32.totalorder %s33, 1
      %s35 = scalar_select %p34, 0, %s33
      %s36 = sadd.s32 1, %s27
      %s37 = scalar_select %p34, %s36, %s27
      %p38 = scmp.ge.s32.totalorder %s37, 2
      %s39 = scalar_select %p38, 0, %s37
      %s40 = ssub.s32 %s27, %s39
      %s41 = ssub.s32 %s28, %s35
      %s42 = sor.u32 %s40, %s41
      %p43 = scmp.eq.s32.totalorder %s42, 0
      %s45 = sadd.s32 %s44, 1
      %s46 = scalar_select %p43, %s44, %s45
      %p49 = pneg %p43
      %p50 = scmp.eq.s32.totalorder %s20, 1
      %p51 = por %p49, %p50
      %p52 = scmp.ne.s32.totalorder %s44, %s47
      %p53 = scmp.eq.s32.totalorder %s20, 0
      %p54 = por %p52, %p53
      %p55 = scmp.ne.s32.totalorder %s44, %s47
      %p56 = scmp.eq.s32.totalorder %s25, 1
      %p57 = por %p55, %p56
      %p58 = scmp.ne.s32.totalorder %s47, %s48
      %p59 = scmp.eq.s32.totalorder %s25, 0
      %p60 = por %p58, %p59
      %p61 = scmp.ne.s32.totalorder %s47, %s48
      %p62 = scmp.eq.s32.totalorder %s26, 1
      %p63 = por %p61, %p62
      %p65 = scmp.ne.s32.totalorder %s48, %s64
      %p66 = scmp.eq.s32.totalorder %s26, 0
      %p67 = por %p65, %p66
      %s68 = ssub.s32 %s27, %s39
      %p69 = scmp.eq.s32.totalorder %s68, 0
      %s71 = sadd.s32 %s70, 1
      %s72 = scalar_select %p69, %s70, %s71
      %p75 = pneg %p69
      %p76 = scmp.eq.s32.totalorder %s20, 1
      %p77 = por %p75, %p76
      %p78 = scmp.ne.s32.totalorder %s70, %s73
      %p79 = scmp.eq.s32.totalorder %s20, 0
      %p80 = por %p78, %p79
      %p81 = scmp.ne.s32.totalorder %s70, %s73
      %p82 = scmp.eq.s32.totalorder %s25, 1
      %p83 = por %p81, %p82
      %p84 = scmp.ne.s32.totalorder %s73, %s74
      %p85 = scmp.eq.s32.totalorder %s25, 0
      %p86 = por %p84, %p85
      %p87 = scmp.ne.s32.totalorder %s73, %s74
      %p88 = scmp.eq.s32.totalorder %s26, 1
      %p89 = por %p87, %p88
      %p91 = scmp.ne.s32.totalorder %s74, %s90
      %p92 = scmp.eq.s32.totalorder %s26, 0
      %p93 = por %p91, %p92
      %s95 = sadd.s32 %s94, 1
      %p98 = scmp.eq.s32.totalorder %s20, 1
      %p99 = scmp.ne.s32.totalorder %s94, %s96
      %p100 = scmp.eq.s32.totalorder %s20, 0
      %p101 = por %p99, %p100
      %p102 = scmp.ne.s32.totalorder %s94, %s96
      %p103 = scmp.eq.s32.totalorder %s25, 1
      %p104 = por %p102, %p103
      %p105 = scmp.ne.s32.totalorder %s96, %s97
      %p106 = scmp.eq.s32.totalorder %s25, 0
      %p107 = por %p105, %p106
      %p108 = scmp.ne.s32.totalorder %s96, %s97
      %p109 = scmp.eq.s32.totalorder %s26, 1
      %p110 = por %p108, %p109
      %p112 = scmp.ne.s32.totalorder %s97, %s111
      %p113 = scmp.eq.s32.totalorder %s26, 0
      %p114 = por %p112, %p113
      %s116 = sadd.s32 %s115, 1
      %p119 = scmp.eq.s32.totalorder %s20, 1
      %p120 = scmp.ne.s32.totalorder %s115, %s117
      %p121 = scmp.eq.s32.totalorder %s20, 0
      %p122 = por %p120, %p121
      %p123 = scmp.ne.s32.totalorder %s115, %s117
      %p124 = scmp.eq.s32.totalorder %s25, 1
      %p125 = por %p123, %p124
      %p126 = scmp.ne.s32.totalorder %s117, %s118
      %p127 = scmp.eq.s32.totalorder %s25, 0
      %p128 = por %p126, %p127
      %p129 = scmp.ne.s32.totalorder %s117, %s118
      %p130 = scmp.eq.s32.totalorder %s26, 1
      %p131 = por %p129, %p130
      %p133 = scmp.ne.s32.totalorder %s118, %s132
      %p134 = scmp.eq.s32.totalorder %s26, 0
      %p135 = por %p133, %p134
      %s137 = sadd.s32 %s136, 1
      %p140 = scmp.eq.s32.totalorder %s20, 1
      %p141 = scmp.ne.s32.totalorder %s136, %s138
      %p142 = scmp.eq.s32.totalorder %s20, 0
      %p143 = por %p141, %p142
      %p144 = scmp.ne.s32.totalorder %s136, %s138
      %p145 = scmp.eq.s32.totalorder %s25, 1
      %p146 = por %p144, %p145
      %p147 = scmp.ne.s32.totalorder %s138, %s139
      %p148 = scmp.eq.s32.totalorder %s25, 0
      %p149 = por %p147, %p148
      %p150 = scmp.ne.s32.totalorder %s138, %s139
      %p151 = scmp.eq.s32.totalorder %s26, 1
      %p152 = por %p150, %p151
      %p154 = scmp.ne.s32.totalorder %s139, %s153
      %p155 = scmp.eq.s32.totalorder %s26, 0
      %p156 = por %p154, %p155
      %s158 = sadd.s32 %s157, 1
      %p161 = scmp.eq.s32.totalorder %s20, 1
      %p162 = scmp.ne.s32.totalorder %s157, %s159
      %p163 = scmp.eq.s32.totalorder %s20, 0
      %p164 = por %p162, %p163
      %p165 = scmp.ne.s32.totalorder %s157, %s159
      %p166 = scmp.eq.s32.totalorder %s25, 1
      %p167 = por %p165, %p166
      %p168 = scmp.ne.s32.totalorder %s159, %s160
      %p169 = scmp.eq.s32.totalorder %s25, 0
      %p170 = por %p168, %p169
      %p171 = scmp.ne.s32.totalorder %s159, %s160
      %p172 = scmp.eq.s32.totalorder %s26, 1
      %p173 = por %p171, %p172
      %p175 = scmp.ne.s32.totalorder %s160, %s174
      %p176 = scmp.eq.s32.totalorder %s26, 0
      %p177 = por %p175, %p176
      %s178 = ssub.s32 %s27, %s39
      %s179 = ssub.s32 %s28, %s35
      %s180 = sor.u32 %s178, %s179
      %p181 = scmp.eq.s32.totalorder %s180, 0
      %s183 = sadd.s32 %s182, 1
      %s184 = scalar_select %p181, %s182, %s183
      %p187 = pneg %p181
      %p188 = scmp.eq.s32.totalorder %s20, 1
      %p189 = por %p187, %p188
      %p190 = scmp.ne.s32.totalorder %s182, %s185
      %p191 = scmp.eq.s32.totalorder %s20, 0
      %p192 = por %p190, %p191
      %p193 = scmp.ne.s32.totalorder %s182, %s185
      %p194 = scmp.eq.s32.totalorder %s25, 1
      %p195 = por %p193, %p194
      %p196 = scmp.ne.s32.totalorder %s185, %s186
      %p197 = scmp.eq.s32.totalorder %s25, 0
      %p198 = por %p196, %p197
      %p199 = scmp.ne.s32.totalorder %s185, %s186
      %p200 = scmp.eq.s32.totalorder %s26, 1
      %p201 = por %p199, %p200
      %p203 = scmp.ne.s32.totalorder %s186, %s202
      %p204 = scmp.eq.s32.totalorder %s26, 0
      %p205 = por %p203, %p204
      %p206 = scmp.le.s32.totalorder 1, %s20
      %p207 = scmp.lt.s32.totalorder %s20, 3
      %p208 = pnand %p206, %p207
      %p209 = pneg %p208
      // Predicated region
      $region9: #{tpu_custom_call.1} parent=5 // pred_check
        _
      $region10: #{tpu_custom_call.1} parent=5 // pred_check_branch
        %211 = sbr.rel (%p208) target = $region12
      $region11: #{tpu_custom_call.1} parent=5 // pred_region
        %s212 = ssub.s32 %s20, 1
        // Predicated region
        $region13: #{tpu_custom_call.1} parent=11 // pred_check
          %p213 = pneg %p107
        $region14: #{tpu_custom_call.1} parent=11 // pred_check_branch
          %215 = sbr.rel (%p213) target = $region16
        $region15: #{tpu_custom_call.1} parent=11 // pred_region
          %s217 = ssub.s32 512, 512
          %218 = vsyncadd [#allocation7], %s217
          %s219 = sshll.u32 [#allocation6], 4
          %s220 = int_to_ptr.vmem [resolvable:$true] %s219
          %225 = dma.hbm_to_vmem [thread:$0]  %s2, 512, %s220, [#allocation7], 128, 128, 8
        $region16: #{tpu_custom_call.1} parent=11 // pred_fallthru
          _
        // Predicated region
        $region17: #{tpu_custom_call.1} parent=11 // pred_check
          %p226 = pneg %p128
        $region18: #{tpu_custom_call.1} parent=11 // pred_check_branch
          %228 = sbr.rel (%p226) target = $region20
        $region19: #{tpu_custom_call.1} parent=11 // pred_region
          _
        $region20: #{tpu_custom_call.1} parent=11 // pred_fallthru
          _
        // Predicated region
        $region21: #{tpu_custom_call.1} parent=11 // pred_check
          %p229 = pneg %p149
        $region22: #{tpu_custom_call.1} parent=11 // pred_check_branch
          %231 = sbr.rel (%p229) target = $region24
        $region23: #{tpu_custom_call.1} parent=11 // pred_region
          _
        $region24: #{tpu_custom_call.1} parent=11 // pred_fallthru
          _
        // Predicated region
        $region25: #{tpu_custom_call.1} parent=11 // pred_check
          %p232 = pneg %p170
        $region26: #{tpu_custom_call.1} parent=11 // pred_check_branch
          %234 = sbr.rel (%p232) target = $region28
        $region27: #{tpu_custom_call.1} parent=11 // pred_region
          _
        $region28: #{tpu_custom_call.1} parent=11 // pred_fallthru
          _
      $region12: #{tpu_custom_call.1} parent=5 // pred_fallthru
        _
      %p235 = scmp.lt.s32.totalorder %s20, 2
      // Predicated region
      $region29: #{tpu_custom_call.1} parent=5 // pred_check
        %p236 = pneg %p235
      $region30: #{tpu_custom_call.1} parent=5 // pred_check_branch
        %238 = sbr.rel (%p236) target = $region32
      $region31: #{tpu_custom_call.1} parent=5 // pred_region
        // Predicated region
        $region33: #{tpu_custom_call.1} parent=31 // pred_check
          %p239 = pneg %p54
        $region34: #{tpu_custom_call.1} parent=31 // pred_check_branch
          %241 = sbr.rel (%p239) target = $region36
        $region35: #{tpu_custom_call.1} parent=31 // pred_region
          %s242 = sand.u32 %s44, 1
          %s243 = scalar_lea.sflag [#allocation4], %s242
          %s244 = sand.u32 %s44, 1
          %s245 = smul.addr %s244, 8
          %s246 = scalar_lea.vmem [#allocation3], %s245
          %s248 = ssub.s32 128, 128
          %249 = vsyncadd %s243, %s248
          %s250 = sadd.s32 %s28, %s27
          %s251 = smul.addr %s250, 128
          %s252 = scalar_lea.hbm %s0, %s251
          %s254 = sshll.u32 %s246, 4
          %s255 = int_to_ptr.vmem [resolvable:$true] %s254
          %257 = dma.hbm_to_vmem [thread:$0]  %s252, 128, %s255, %s243
        $region36: #{tpu_custom_call.1} parent=31 // pred_fallthru
          _
        // Predicated region
        $region37: #{tpu_custom_call.1} parent=31 // pred_check
          %p258 = pneg %p80
        $region38: #{tpu_custom_call.1} parent=31 // pred_check_branch
          %260 = sbr.rel (%p258) target = $region40
        $region39: #{tpu_custom_call.1} parent=31 // pred_region
          %p261 = scmp.lt.s32.totalorder %s27, 1
          %s262 = scalar_select %p261, %s27, 1
          %s263 = scalar_lea.vmem %s1, %s262
        $region40: #{tpu_custom_call.1} parent=31 // pred_fallthru
          _
      $region32: #{tpu_custom_call.1} parent=5 // pred_fallthru
        _
      %p264 = scmp.le.s32.totalorder 1, %s20
      %p265 = scmp.lt.s32.totalorder %s20, 3
      %p266 = pnand %p264, %p265
      %p267 = pneg %p266
      // Predicated region
      $region41: #{tpu_custom_call.1} parent=5 // pred_check
        _
      $region42: #{tpu_custom_call.1} parent=5 // pred_check_branch
        %269 = sbr.rel (%p266) target = $region44
      $region43: #{tpu_custom_call.1} parent=5 // pred_region
        %s270 = ssub.s32 %s20, 1
        %s271 = sand.u32 %s47, 1
        %s272 = scalar_lea.sflag [#allocation4], %s271
        %s273 = sand.u32 %s47, 1
        %s274 = smul.addr %s273, 8
        %s275 = scalar_lea.vmem [#allocation3], %s274
        // Predicated region
        $region45: #{tpu_custom_call.1} parent=43 // pred_check
          %p276 = pneg %p60
        $region46: #{tpu_custom_call.1} parent=43 // pred_check_branch
          %278 = sbr.rel (%p276) target = $region48
        $region47: #{tpu_custom_call.1} parent=43 // pred_region
          %279 = dma.done %s272, 128
        $region48: #{tpu_custom_call.1} parent=43 // pred_fallthru
          _
        // Predicated region
        $region49: #{tpu_custom_call.1} parent=43 // pred_check
          %p280 = pneg %p107
        $region50: #{tpu_custom_call.1} parent=43 // pred_check_branch
          %282 = sbr.rel (%p280) target = $region52
        $region51: #{tpu_custom_call.1} parent=43 // pred_region
          %283 = dma.done [#allocation7], 512
        $region52: #{tpu_custom_call.1} parent=43 // pred_fallthru
          _
        %s284 = sand.u32 %s47, 1
        %s285 = scalar_lea.sflag [#allocation4], %s284
        %s286 = sand.u32 %s47, 1
        %s287 = smul.addr %s286, 8
        %s288 = scalar_lea.vmem [#allocation3], %s287
        %p289 = pneg %p60
        %p290 = pneg %p57
        %p291 = scmp.lt.s32.totalorder %s29, 1
        %s292 = scalar_select %p291, %s29, 1
        %s293 = scalar_lea.vmem %s1, %s292
        %p294 = pneg %p86
        %p295 = pneg %p83
        %p296 = pneg %p107
        %p297 = pneg %p104
        %p298 = pneg %p128
        %p299 = pneg %p125
        %p300 = pneg %p149
        %p301 = pneg %p146
        %p302 = pneg %p170
        %p303 = pneg %p167
        %p304 = pneg %p198
        %p305 = pneg %p195
        %s306 = sand.u32 %s185, 1
        %s307 = scalar_lea.sflag [#allocation5], %s306
        %s308 = sand.u32 %s185, 1
        %s309 = scalar_lea.vmem [#allocation8], %s308
        %p310 = scmp.lt.s32.totalorder %s29, 1
        %s311 = scalar_select %p310, %s29, 1
        %s312 = scalar_lea.vmem %s1, %s311
        %v313 = vld [vmem:[%s275] sm:$0xff]
        %v314 = vld [vmem:[%s312] sm:$0x1]
        %v316 = vlaneseq
        %v317 = vshrl.u32 %v316, 7
        %v318 = vsub.s32 0, %v317
        %v319 = vrot.slane %v314, %v318
        %v321 = vadd.f32 %v313, %v319
        %vm322 = vcmask 261120
        %v323 = vsel %vm322, %v321, 0.0
        %324 = vadd.xlane.f32.xlu0 %v323
        %v325 = vpop.xlane.xlu0 %324
        %v326 = vrcp.pop 32.0
        %v327 = vmul.f32 %v325, %v326
        %v328 = vsub.f32 %v321, %v327
        %v329 = vmul.f32 %v328, %v328
        %v330 = vsel %vm322, %v329, 0.0
        %331 = vadd.xlane.f32.xlu0 %v330
        %v332 = vpop.xlane.xlu0 %331
        %v333 = vmul.f32 %v332, %v326
        %v334 = vadd.f32 %v333, 1e-07
        %v335 = vrsqrt.pop %v334
        %v336 = vmul.f32 %v328, %v335
        %v337 = vld [vmem:[#allocation6] sm:$0xff]
        %v338 = vld [vmem:[#allocation6 + $0x8] sm:$0xff]
        %v339 = vld [vmem:[#allocation6 + $0x10] sm:$0xff]
        %v340 = vld [vmem:[#allocation6 + $0x18] sm:$0xff]
        %v341 = vld [vmem:[%s3] sm:$0x1]
        %v343 = vlaneseq
        %v344 = vshrl.u32 %v343, 7
        %v345 = vsub.s32 0, %v344
        %v346 = vrot.slane %v341, %v345
        %v349 = vsel %vm322, %v336, 0
        %351 = vmatprep.subr.mxu0 0.0
        %352 = vmatpush1.msra.mxu0 %v337
        %353 = vmatprep.subr.mxu0 0.0
        %354 = vmatpush1.msra.mxu0 %v338
        %355 = vmatprep.subr.mxu0 0.0
        %356 = vmatpush1.msra.mxu0 %v339
        %357 = vmatprep.subr.mxu0 0.0
        %358 = vmatpush1.msra.mxu0 %v340
        %359 = vmatprep.subr.mxu0 0.0
        %360 = vmatpush1.msra.mxu0 0.0
        %361 = vmatprep.subr.mxu0 0.0
        %362 = vmatpush1.msra.mxu0 0.0
        %363 = vmatprep.subr.mxu0 0.0
        %364 = vmatpush1.msra.mxu0 0.0
        %365 = vmatprep.subr.mxu0 0.0
        %366 = vmatpush1.msra.mxu0 0.0
        %367 = vmatprep.subr.mxu0 0.0
        %368 = vmatpush1.msra.mxu0 0.0
        %369 = vmatprep.subr.mxu0 0.0
        %370 = vmatpush1.msra.mxu0 0.0
        %371 = vmatprep.subr.mxu0 0.0
        %372 = vmatpush1.msra.mxu0 0.0
        %373 = vmatprep.subr.mxu0 0.0
        %374 = vmatpush1.msra.mxu0 0.0
        %375 = vmatprep.subr.mxu0 0.0
        %376 = vmatpush1.msra.mxu0 0.0
        %377 = vmatprep.subr.mxu0 0.0
        %378 = vmatpush1.msra.mxu0 0.0
        %379 = vmatprep.subr.mxu0 0.0
        %380 = vmatpush1.msra.mxu0 0.0
        %381 = vmatprep.subr.mxu0 0.0
        %382 = vmatpush1.msra.mxu0 0.0
        %383 = vmatprep.subr.mxu0 0.0
        %384 = vmatpush1.msra.mxu0 0.0
        %385 = vmatprep.subr.mxu0 0.0
        %386 = vmatpush1.msra.mxu0 0.0
        %387 = vmatprep.subr.mxu0 0.0
        %388 = vmatpush1.msra.mxu0 0.0
        %389 = vmatprep.subr.mxu0 0.0
        %390 = vmatpush1.msra.mxu0 0.0
        %391 = vmatprep.subr.mxu0 0.0
        %392 = vmatpush1.msra.mxu0 0.0
        %393 = vmatprep.subr.mxu0 0.0
        %394 = vmatpush1.msra.mxu0 0.0
        %395 = vmatprep.subr.mxu0 0.0
        %396 = vmatpush1.msra.mxu0 0.0
        %397 = vmatprep.subr.mxu0 0.0
        %398 = vmatpush1.msra.mxu0 0.0
        %399 = vmatprep.subr.mxu0 0.0
        %400 = vmatpush1.msra.mxu0 0.0
        %401 = vmatprep.subr.mxu0 0.0
        %402 = vmatpush1.msra.mxu0 0.0
        %403 = vmatprep.subr.mxu0 0.0
        %404 = vmatpush1.msra.mxu0 0.0
        %405 = vmatprep.subr.mxu0 0.0
        %406 = vmatpush1.msra.mxu0 0.0
        %407 = vmatprep.subr.mxu0 0.0
        %408 = vmatpush1.msra.mxu0 0.0
        %409 = vmatprep.subr.mxu0 0.0
        %410 = vmatpush1.msra.mxu0 0.0
        %411 = vmatprep.subr.mxu0 0.0
        %412 = vmatpush1.msra.mxu0 0.0
        %413 = vmatprep.subr.mxu0 0.0
        %414 = vmatpush1.msra.mxu0 0.0
        %415 = vmatprep.mubr.f32.mxu0 0.0
        %416 = vmatmul.mubr.f32.gmra.mrb[0].mxu0 %v349
        %v417 = vpop.f32.mrb[0].mxu0
        %v418 = vadd.f32 %v346, %v417
        %v419 = vpop.f32.mrb[0].mxu0
        %420 = vdwg.mxu0
        %v421 = vmul.f32 %v418, 0.70710677
        %v422 = verf.f32.pop %v421
        %v423 = vadd.f32 %v422, 1.0
        %v424 = vld [vmem:[%s4] sm:$0x1]
        %v426 = vlaneseq
        %v427 = vshrl.u32 %v426, 7
        %v428 = vsub.s32 0, %v427
        %v429 = vrot.slane %v424, %v428
        %v431 = vmul.f32 %v418, %v429
        %v432 = vmul.f32 %v431, %v423
        %v433 = vsel %vm322, %v432, 0.0
        %434 = vadd.xlane.f32.xlu0 %v433
        %v435 = vpop.xlane.xlu0 %434
        %s436 = sld [smem:[#allocation2]]
        %v437 = vstv %s436
        %v438 = vadd.f32 %v435, %v437
        %439 = vxpose.xlu0.b32.start [1/16] %v438, 128
        %440 = vxpose.xlu0.b32.cont [2/16] 0.0, 128
        %441 = vxpose.xlu0.b32.cont [3/16] 0.0, 128
        %442 = vxpose.xlu0.b32.cont [4/16] 0.0, 128
        %443 = vxpose.xlu0.b32.cont [5/16] 0.0, 128
        %444 = vxpose.xlu0.b32.cont [6/16] 0.0, 128
        %445 = vxpose.xlu0.b32.cont [7/16] 0.0, 128
        %446 = vxpose.xlu0.b32.cont [8/16] 0.0, 128
        %447 = vxpose.xlu0.b32.cont [9/16] 0.0, 128
        %448 = vxpose.xlu0.b32.cont [10/16] 0.0, 128
        %449 = vxpose.xlu0.b32.cont [11/16] 0.0, 128
        %450 = vxpose.xlu0.b32.cont [12/16] 0.0, 128
        %451 = vxpose.xlu0.b32.cont [13/16] 0.0, 128
        %452 = vxpose.xlu0.b32.cont [14/16] 0.0, 128
        %453 = vxpose.xlu0.b32.cont [15/16] 0.0, 128
        %454 = vxpose.xlu0.b32.end [16/16] 0.0, 128
        %v455 = vpop.trf.xlu0
        %v456 = vpop.trf.xlu0
        %v457 = vpop.trf.xlu0
        %v458 = vpop.trf.xlu0
        %v459 = vpop.trf.xlu0
        %v460 = vpop.trf.xlu0
        %v461 = vpop.trf.xlu0
        %v462 = vpop.trf.xlu0
        %v463 = vpop.trf.xlu0
        %v464 = vpop.trf.xlu0
        %v465 = vpop.trf.xlu0
        %v466 = vpop.trf.xlu0
        %v467 = vpop.trf.xlu0
        %v468 = vpop.trf.xlu0
        %v469 = vpop.trf.xlu0
        %v470 = vpop.trf.xlu0
        %vm471 = vcmask 57344
        %472 = vst.msk [vmem:[%s309] sm:$0x1] %vm471, %v455
        %s473 = sand.u32 %s185, 1
        %s474 = scalar_lea.sflag [#allocation5], %s473
        %s475 = sand.u32 %s185, 1
        %s476 = scalar_lea.vmem [#allocation8], %s475
        // Predicated region
        $region53: #{tpu_custom_call.1} parent=43 // pred_check
          %p477 = pneg %p195
        $region54: #{tpu_custom_call.1} parent=43 // pred_check_branch
          %479 = sbr.rel (%p477) target = $region56
        $region55: #{tpu_custom_call.1} parent=43 // pred_region
          %s481 = ssub.s32 16, 16
          %482 = vsyncadd %s474, %s481
          %s483 = sadd.s32 %s30, %s29
          %s484 = smul.addr %s483, 16
          %s485 = scalar_lea.hbm %s6, %s484
          %s487 = sshll.u32 %s476, 4
          %s488 = int_to_ptr.vmem [resolvable:$true] %s487
          %490 = dma.vmem_to_hbm [thread:$0]  %s488, 16, %s485, %s474
        $region56: #{tpu_custom_call.1} parent=43 // pred_fallthru
          _
      $region44: #{tpu_custom_call.1} parent=5 // pred_fallthru
        _
      %p491 = scmp.le.s32.totalorder 2, %s20
      // Predicated region
      $region57: #{tpu_custom_call.1} parent=5 // pred_check
        %p492 = pneg %p491
      $region58: #{tpu_custom_call.1} parent=5 // pred_check_branch
        %494 = sbr.rel (%p492) target = $region60
      $region59: #{tpu_custom_call.1} parent=5 // pred_region
        %s495 = ssub.s32 %s20, 2
        // Predicated region
        $region61: #{tpu_custom_call.1} parent=59 // pred_check
          %p496 = pneg %p201
        $region62: #{tpu_custom_call.1} parent=59 // pred_check_branch
          %498 = sbr.rel (%p496) target = $region64
        $region63: #{tpu_custom_call.1} parent=59 // pred_region
          %s499 = sand.u32 %s186, 1
          %s500 = scalar_lea.sflag [#allocation5], %s499
          %s501 = sand.u32 %s186, 1
          %s502 = scalar_lea.vmem [#allocation8], %s501
          %503 = dma.done %s500, 16
        $region64: #{tpu_custom_call.1} parent=59 // pred_fallthru
          _
      $region60: #{tpu_custom_call.1} parent=5 // pred_fallthru
        _
    $region6: #{tpu_custom_call.1} parent=1 // loop_footer
      %s24 = sadd.s32 1, %s20
    $region7: #{tpu_custom_call.1} parent=1 // loop_footer_branch
      %19 = sbr.rel target = $region3
    $region8: #{tpu_custom_call.1} parent=1 // loop_exit
      _
    %504 = vsyncpa [#allocation4], 1
    %s505 = scalar_lea.sflag [#allocation4], 1
    %506 = vsyncpa %s505, 1
    %507 = vsyncpa [#allocation7], 1
    %508 = vsyncpa [#allocation5], 1
    %s509 = scalar_lea.sflag [#allocation5], 1
    %510 = vsyncpa %s509, 1

// kernel: tpu_custom_call.1
$region0: #{tpu_custom_call.1}
  #allocation0 [shape = 'u32[]', space=smem, size = 0x4, offset = 0x4, fixed_abs, tag = 'smem constant byte address 0x4 - core index']
  #allocation1 [shape = 'u32[144,128]{1,0:T(1,128)}', space=vmem, size = 0x12000, scoped, tag = 'internal scratch']
  #allocation2 [shape = 'f32[1]{0:T(128)S(6)}', space=smem, size = 0x200, scoped, tag = 'scoped memory for tpu_custom_call.1']
  %s0 = inlined_call_operand.hbm [shape: f32[2,8,32], index: 0, kind: input, shape index: {}]
  %s1 = inlined_call_operand.vmem [shape: f32[2,1,32], index: 1, kind: input, shape index: {}]
  %s2 = inlined_call_operand.hbm [shape: f32[32,32], index: 2, kind: input, shape index: {}]
  %s3 = inlined_call_operand.vmem [shape: f32[1,32], index: 3, kind: input, shape index: {}]
  %s4 = inlined_call_operand.vmem [shape: f32[1,32], index: 4, kind: input, shape index: {}]
  %s5 = inlined_call_operand.<no memory space> [shape: f32[1], index: 5, kind: input, shape index: {}]
  %s6 = inlined_call_operand.hbm [shape: f32[2,1,1,8], index: 6, kind: output, shape index: {}]
  %s7 = sld [smem:[#allocation0]]
  $region65: #{tpu_custom_call.1} parent=0
    _
  %s9 = ssub.s32 1, %s7
  %s10 = scalar_select 0, %s9, %s7
  %11 = sst [smem:[#allocation2]] %s5
  $region1: #{tpu_custom_call.1} parent=0
    #allocation3 [shape = 'u8[8192]{0}', space=vmem, size = 0x2000, scoped, tag = 'input window, operand 0']
    #allocation4 [shape = 's32[2]{0}', space=sflag, size = 0x8, scoped, tag = 'scoped memory for tpu_custom_call.1']
    #allocation5 [shape = 's32[2]{0}', space=sflag, size = 0x8, scoped, tag = 'scoped memory for tpu_custom_call.1']
    #allocation6 [shape = 'u8[16384]{0}', space=vmem, size = 0x4000, scoped, tag = 'input window, operand 2, single buffered']
    #allocation7 [shape = 's32[1]{0}', space=sflag, size = 0x4, scoped, tag = 'scoped memory for tpu_custom_call.1']
    #allocation8 [shape = 'u8[1024]{0}', space=vmem, size = 0x400, scoped, tag = 'output window, operand 0']
    %12 = vsyncpa [#allocation4], 0
    %s13 = scalar_lea.sflag [#allocation4], 1
    %14 = vsyncpa %s13, 0
    %15 = vsyncpa [#allocation7], 0
    %16 = vsyncpa [#allocation5], 0
    %s17 = scalar_lea.sflag [#allocation5], 1
    %18 = vsyncpa %s17, 0
    loop: start=0, step=1, limit=4
    $region2: #{tpu_custom_call.1} parent=1 // loop_pre_header
      _
    $region3: #{tpu_custom_call.1} parent=1 // loop_header
      %s20 = sphi 0, %s24
      %p21 = scmp.ge.s32.totalorder %s20, 4
      %s27 = sphi 0, %s39
      %s28 = sphi 0, %s35
      %s29 = sphi 0, %s27
      %s30 = sphi 0, %s28
      %s31 = sphi 0, %s29
      %s32 = sphi 0, %s30
      %s44 = sphi 0, %s46
      %s47 = sphi 0, %s44
      %s48 = sphi 0, %s47
      %s64 = sphi 0, %s48
      %s70 = sphi 0, %s72
      %s73 = sphi 0, %s70
      %s74 = sphi 0, %s73
      %s90 = sphi 0, %s74
      %s94 = sphi 0, %s94
      %s96 = sphi 0, %s94
      %s97 = sphi 0, %s96
      %s111 = sphi 0, %s97
      %s115 = sphi 0, %s115
      %s117 = sphi 0, %s115
      %s118 = sphi 0, %s117
      %s132 = sphi 0, %s118
      %s136 = sphi 0, %s136
      %s138 = sphi 0, %s136
      %s139 = sphi 0, %s138
      %s153 = sphi 0, %s139
      %s157 = sphi 0, %s157
      %s159 = sphi 0, %s157
      %s160 = sphi 0, %s159
      %s174 = sphi 0, %s160
      %s182 = sphi 0, %s184
      %s185 = sphi 0, %s182
      %s186 = sphi 0, %s185
      %s202 = sphi 0, %s186
    $region4: #{tpu_custom_call.1} parent=1 // loop_header_branch
      %23 = sbr.rel (%p21) target = $region8
    $region5: #{tpu_custom_call.1} parent=1 // loop_body
      %s25 = ssub.s32 %s20, 1
      %s26 = ssub.s32 %s20, 2
      %s33 = sadd.s32 1, %s28
      %p34 = scmp.ge.s32.totalorder %s33, 1
      %s35 = scalar_select %p34, 0, %s33
      %s36 = sadd.s32 1, %s27
      %s37 = scalar_select %p34, %s36, %s27
      %p38 = scmp.ge.s32.totalorder %s37, 2
      %s39 = scalar_select %p38, 0, %s37
      %s40 = ssub.s32 %s27, %s39
      %s41 = ssub.s32 %s28, %s35
      %s42 = sor.u32 %s40, %s41
      %p43 = scmp.eq.s32.totalorder %s42, 0
      %s45 = sadd.s32 %s44, 1
      %s46 = scalar_select %p43, %s44, %s45
      %p49 = pneg %p43
      %p50 = scmp.eq.s32.totalorder %s20, 1
      %p51 = por %p49, %p50
      %p52 = scmp.ne.s32.totalorder %s44, %s47
      %p53 = scmp.eq.s32.totalorder %s20, 0
      %p54 = por %p52, %p53
      %p55 = scmp.ne.s32.totalorder %s44, %s47
      %p56 = scmp.eq.s32.totalorder %s25, 1
      %p57 = por %p55, %p56
      %p58 = scmp.ne.s32.totalorder %s47, %s48
      %p59 = scmp.eq.s32.totalorder %s25, 0
      %p60 = por %p58, %p59
      %p61 = scmp.ne.s32.totalorder %s47, %s48
      %p62 = scmp.eq.s32.totalorder %s26, 1
      %p63 = por %p61, %p62
      %p65 = scmp.ne.s32.totalorder %s48, %s64
      %p66 = scmp.eq.s32.totalorder %s26, 0
      %p67 = por %p65, %p66
      %s68 = ssub.s32 %s27, %s39
      %p69 = scmp.eq.s32.totalorder %s68, 0
      %s71 = sadd.s32 %s70, 1
      %s72 = scalar_select %p69, %s70, %s71
      %p75 = pneg %p69
      %p76 = scmp.eq.s32.totalorder %s20, 1
      %p77 = por %p75, %p76
      %p78 = scmp.ne.s32.totalorder %s70, %s73
      %p79 = scmp.eq.s32.totalorder %s20, 0
      %p80 = por %p78, %p79
      %p81 = scmp.ne.s32.totalorder %s70, %s73
      %p82 = scmp.eq.s32.totalorder %s25, 1
      %p83 = por %p81, %p82
      %p84 = scmp.ne.s32.totalorder %s73, %s74
      %p85 = scmp.eq.s32.totalorder %s25, 0
      %p86 = por %p84, %p85
      %p87 = scmp.ne.s32.totalorder %s73, %s74
      %p88 = scmp.eq.s32.totalorder %s26, 1
      %p89 = por %p87, %p88
      %p91 = scmp.ne.s32.totalorder %s74, %s90
      %p92 = scmp.eq.s32.totalorder %s26, 0
      %p93 = por %p91, %p92
      %s95 = sadd.s32 %s94, 1
      %p98 = scmp.eq.s32.totalorder %s20, 1
      %p99 = scmp.ne.s32.totalorder %s94, %s96
      %p100 = scmp.eq.s32.totalorder %s20, 0
      %p101 = por %p99, %p100
      %p102 = scmp.ne.s32.totalorder %s94, %s96
      %p103 = scmp.eq.s32.totalorder %s25, 1
      %p104 = por %p102, %p103
      %p105 = scmp.ne.s32.totalorder %s96, %s97
      %p106 = scmp.eq.s32.totalorder %s25, 0
      %p107 = por %p105, %p106
      %p108 = scmp.ne.s32.totalorder %s96, %s97
      %p109 = scmp.eq.s32.totalorder %s26, 1
      %p110 = por %p108, %p109
      %p112 = scmp.ne.s32.totalorder %s97, %s111
      %p113 = scmp.eq.s32.totalorder %s26, 0
      %p114 = por %p112, %p113
      %s116 = sadd.s32 %s115, 1
      %p119 = scmp.eq.s32.totalorder %s20, 1
      %p120 = scmp.ne.s32.totalorder %s115, %s117
      %p121 = scmp.eq.s32.totalorder %s20, 0
      %p122 = por %p120, %p121
      %p123 = scmp.ne.s32.totalorder %s115, %s117
      %p124 = scmp.eq.s32.totalorder %s25, 1
      %p125 = por %p123, %p124
      %p126 = scmp.ne.s32.totalorder %s117, %s118
      %p127 = scmp.eq.s32.totalorder %s25, 0
      %p128 = por %p126, %p127
      %p129 = scmp.ne.s32.totalorder %s117, %s118
      %p130 = scmp.eq.s32.totalorder %s26, 1
      %p131 = por %p129, %p130
      %p133 = scmp.ne.s32.totalorder %s118, %s132
      %p134 = scmp.eq.s32.totalorder %s26, 0
      %p135 = por %p133, %p134
      %s137 = sadd.s32 %s136, 1
      %p140 = scmp.eq.s32.totalorder %s20, 1
      %p141 = scmp.ne.s32.totalorder %s136, %s138
      %p142 = scmp.eq.s32.totalorder %s20, 0
      %p143 = por %p141, %p142
      %p144 = scmp.ne.s32.totalorder %s136, %s138
      %p145 = scmp.eq.s32.totalorder %s25, 1
      %p146 = por %p144, %p145
      %p147 = scmp.ne.s32.totalorder %s138, %s139
      %p148 = scmp.eq.s32.totalorder %s25, 0
      %p149 = por %p147, %p148
      %p150 = scmp.ne.s32.totalorder %s138, %s139
      %p151 = scmp.eq.s32.totalorder %s26, 1
      %p152 = por %p150, %p151
      %p154 = scmp.ne.s32.totalorder %s139, %s153
      %p155 = scmp.eq.s32.totalorder %s26, 0
      %p156 = por %p154, %p155
      %s158 = sadd.s32 %s157, 1
      %p161 = scmp.eq.s32.totalorder %s20, 1
      %p162 = scmp.ne.s32.totalorder %s157, %s159
      %p163 = scmp.eq.s32.totalorder %s20, 0
      %p164 = por %p162, %p163
      %p165 = scmp.ne.s32.totalorder %s157, %s159
      %p166 = scmp.eq.s32.totalorder %s25, 1
      %p167 = por %p165, %p166
      %p168 = scmp.ne.s32.totalorder %s159, %s160
      %p169 = scmp.eq.s32.totalorder %s25, 0
      %p170 = por %p168, %p169
      %p171 = scmp.ne.s32.totalorder %s159, %s160
      %p172 = scmp.eq.s32.totalorder %s26, 1
      %p173 = por %p171, %p172
      %p175 = scmp.ne.s32.totalorder %s160, %s174
      %p176 = scmp.eq.s32.totalorder %s26, 0
      %p177 = por %p175, %p176
      %s178 = ssub.s32 %s27, %s39
      %s179 = ssub.s32 %s28, %s35
      %s180 = sor.u32 %s178, %s179
      %p181 = scmp.eq.s32.totalorder %s180, 0
      %s183 = sadd.s32 %s182, 1
      %s184 = scalar_select %p181, %s182, %s183
      %p187 = pneg %p181
      %p188 = scmp.eq.s32.totalorder %s20, 1
      %p189 = por %p187, %p188
      %p190 = scmp.ne.s32.totalorder %s182, %s185
      %p191 = scmp.eq.s32.totalorder %s20, 0
      %p192 = por %p190, %p191
      %p193 = scmp.ne.s32.totalorder %s182, %s185
      %p194 = scmp.eq.s32.totalorder %s25, 1
      %p195 = por %p193, %p194
      %p196 = scmp.ne.s32.totalorder %s185, %s186
      %p197 = scmp.eq.s32.totalorder %s25, 0
      %p198 = por %p196, %p197
      %p199 = scmp.ne.s32.totalorder %s185, %s186
      %p200 = scmp.eq.s32.totalorder %s26, 1
      %p201 = por %p199, %p200
      %p203 = scmp.ne.s32.totalorder %s186, %s202
      %p204 = scmp.eq.s32.totalorder %s26, 0
      %p205 = por %p203, %p204
      %p206 = scmp.le.s32.totalorder 1, %s20
      %p207 = scmp.lt.s32.totalorder %s20, 3
      %p208 = pnand %p206, %p207
      %p209 = pneg %p208
      // Predicated region
      $region9: #{tpu_custom_call.1} parent=5 // pred_check
        _
      $region10: #{tpu_custom_call.1} parent=5 // pred_check_branch
        %211 = sbr.rel (%p208) target = $region12
      $region11: #{tpu_custom_call.1} parent=5 // pred_region
        %s212 = ssub.s32 %s20, 1
        // Predicated region
        $region13: #{tpu_custom_call.1} parent=11 // pred_check
          %p213 = pneg %p107
        $region14: #{tpu_custom_call.1} parent=11 // pred_check_branch
          %215 = sbr.rel (%p213) target = $region16
        $region15: #{tpu_custom_call.1} parent=11 // pred_region
          %s217 = ssub.s32 512, 512
          %218 = vsyncadd [#allocation7], %s217
          %s219 = sshll.u32 [#allocation6], 4
          %s220 = int_to_ptr.vmem [resolvable:$true] %s219
          %225 = dma.hbm_to_vmem [thread:$0]  %s2, 512, %s220, [#allocation7], 128, 128, 8
        $region16: #{tpu_custom_call.1} parent=11 // pred_fallthru
          _
        // Predicated region
        $region17: #{tpu_custom_call.1} parent=11 // pred_check
          %p226 = pneg %p128
        $region18: #{tpu_custom_call.1} parent=11 // pred_check_branch
          %228 = sbr.rel (%p226) target = $region20
        $region19: #{tpu_custom_call.1} parent=11 // pred_region
          _
        $region20: #{tpu_custom_call.1} parent=11 // pred_fallthru
          _
        // Predicated region
        $region21: #{tpu_custom_call.1} parent=11 // pred_check
          %p229 = pneg %p149
        $region22: #{tpu_custom_call.1} parent=11 // pred_check_branch
          %231 = sbr.rel (%p229) target = $region24
        $region23: #{tpu_custom_call.1} parent=11 // pred_region
          _
        $region24: #{tpu_custom_call.1} parent=11 // pred_fallthru
          _
        // Predicated region
        $region25: #{tpu_custom_call.1} parent=11 // pred_check
          %p232 = pneg %p170
        $region26: #{tpu_custom_call.1} parent=11 // pred_check_branch
          %234 = sbr.rel (%p232) target = $region28
        $region27: #{tpu_custom_call.1} parent=11 // pred_region
          _
        $region28: #{tpu_custom_call.1} parent=11 // pred_fallthru
          _
      $region12: #{tpu_custom_call.1} parent=5 // pred_fallthru
        _
      %p235 = scmp.lt.s32.totalorder %s20, 2
      // Predicated region
      $region29: #{tpu_custom_call.1} parent=5 // pred_check
        %p236 = pneg %p235
      $region30: #{tpu_custom_call.1} parent=5 // pred_check_branch
        %238 = sbr.rel (%p236) target = $region32
      $region31: #{tpu_custom_call.1} parent=5 // pred_region
        // Predicated region
        $region33: #{tpu_custom_call.1} parent=31 // pred_check
          %p239 = pneg %p54
        $region34: #{tpu_custom_call.1} parent=31 // pred_check_branch
          %241 = sbr.rel (%p239) target = $region36
        $region35: #{tpu_custom_call.1} parent=31 // pred_region
          %s242 = sand.u32 %s44, 1
          %s243 = scalar_lea.sflag [#allocation4], %s242
          %s244 = sand.u32 %s44, 1
          %s245 = smul.addr %s244, 8
          %s246 = scalar_lea.vmem [#allocation3], %s245
          %s248 = ssub.s32 128, 128
          %249 = vsyncadd %s243, %s248
          %s250 = sadd.s32 %s28, %s27
          %s251 = smul.addr %s250, 128
          %s252 = scalar_lea.hbm %s0, %s251
          %s254 = sshll.u32 %s246, 4
          %s255 = int_to_ptr.vmem [resolvable:$true] %s254
          %257 = dma.hbm_to_vmem [thread:$0]  %s252, 128, %s255, %s243
        $region36: #{tpu_custom_call.1} parent=31 // pred_fallthru
          _
        // Predicated region
        $region37: #{tpu_custom_call.1} parent=31 // pred_check
          %p258 = pneg %p80
        $region38: #{tpu_custom_call.1} parent=31 // pred_check_branch
          %260 = sbr.rel (%p258) target = $region40
        $region39: #{tpu_custom_call.1} parent=31 // pred_region
          %p261 = scmp.lt.s32.totalorder %s27, 1
          %s262 = scalar_select %p261, %s27, 1
          %s263 = scalar_lea.vmem %s1, %s262
        $region40: #{tpu_custom_call.1} parent=31 // pred_fallthru
          _
      $region32: #{tpu_custom_call.1} parent=5 // pred_fallthru
        _
      %p264 = scmp.le.s32.totalorder 1, %s20
      %p265 = scmp.lt.s32.totalorder %s20, 3
      %p266 = pnand %p264, %p265
      %p267 = pneg %p266
      // Predicated region
      $region41: #{tpu_custom_call.1} parent=5 // pred_check
        _
      $region42: #{tpu_custom_call.1} parent=5 // pred_check_branch
        %269 = sbr.rel (%p266) target = $region44
      $region43: #{tpu_custom_call.1} parent=5 // pred_region
        %s270 = ssub.s32 %s20, 1
        %s271 = sand.u32 %s47, 1
        %s272 = scalar_lea.sflag [#allocation4], %s271
        %s273 = sand.u32 %s47, 1
        %s274 = smul.addr %s273, 8
        %s275 = scalar_lea.vmem [#allocation3], %s274
        // Predicated region
        $region45: #{tpu_custom_call.1} parent=43 // pred_check
          %p276 = pneg %p60
        $region46: #{tpu_custom_call.1} parent=43 // pred_check_branch
          %278 = sbr.rel (%p276) target = $region48
        $region47: #{tpu_custom_call.1} parent=43 // pred_region
          %279 = dma.done %s272, 128
        $region48: #{tpu_custom_call.1} parent=43 // pred_fallthru
          _
        // Predicated region
        $region49: #{tpu_custom_call.1} parent=43 // pred_check
          %p280 = pneg %p107
        $region50: #{tpu_custom_call.1} parent=43 // pred_check_branch
          %282 = sbr.rel (%p280) target = $region52
        $region51: #{tpu_custom_call.1} parent=43 // pred_region
          %283 = dma.done [#allocation7], 512
        $region52: #{tpu_custom_call.1} parent=43 // pred_fallthru
          _
        %s284 = sand.u32 %s47, 1
        %s285 = scalar_lea.sflag [#allocation4], %s284
        %s286 = sand.u32 %s47, 1
        %s287 = smul.addr %s286, 8
        %s288 = scalar_lea.vmem [#allocation3], %s287
        %p289 = pneg %p60
        %p290 = pneg %p57
        %p291 = scmp.lt.s32.totalorder %s29, 1
        %s292 = scalar_select %p291, %s29, 1
        %s293 = scalar_lea.vmem %s1, %s292
        %p294 = pneg %p86
        %p295 = pneg %p83
        %p296 = pneg %p107
        %p297 = pneg %p104
        %p298 = pneg %p128
        %p299 = pneg %p125
        %p300 = pneg %p149
        %p301 = pneg %p146
        %p302 = pneg %p170
        %p303 = pneg %p167
        %p304 = pneg %p198
        %p305 = pneg %p195
        %s306 = sand.u32 %s185, 1
        %s307 = scalar_lea.sflag [#allocation5], %s306
        %s308 = sand.u32 %s185, 1
        %s309 = scalar_lea.vmem [#allocation8], %s308
        %p310 = scmp.lt.s32.totalorder %s29, 1
        %s311 = scalar_select %p310, %s29, 1
        %s312 = scalar_lea.vmem %s1, %s311
        %v313 = vld [vmem:[%s275] sm:$0xff]
        %v314 = vld [vmem:[%s312] sm:$0x1]
        %v316 = vlaneseq
        %v317 = vshrl.u32 %v316, 7
        %v318 = vsub.s32 0, %v317
        %v319 = vrot.slane %v314, %v318
        %v321 = vadd.f32 %v313, %v319
        %vm322 = vcmask 261120
        %v323 = vsel %vm322, %v321, 0.0
        %324 = vadd.xlane.f32.xlu0 %v323
        %v325 = vpop.xlane.xlu0 %324
        %v326 = vrcp.pop 32.0
        %v327 = vmul.f32 %v325, %v326
        %v328 = vsub.f32 %v321, %v327
        %v329 = vmul.f32 %v328, %v328
        %v330 = vsel %vm322, %v329, 0.0
        %331 = vadd.xlane.f32.xlu0 %v330
        %v332 = vpop.xlane.xlu0 %331
        %v333 = vmul.f32 %v332, %v326
        %v334 = vadd.f32 %v333, 1e-07
        %v335 = vrsqrt.pop %v334
        %v336 = vmul.f32 %v328, %v335
        %v337 = vld [vmem:[#allocation6] sm:$0xff]
        %v338 = vld [vmem:[#allocation6 + $0x8] sm:$0xff]
        %v339 = vld [vmem:[#allocation6 + $0x10] sm:$0xff]
        %v340 = vld [vmem:[#allocation6 + $0x18] sm:$0xff]
        %v341 = vld [vmem:[%s3] sm:$0x1]
        %v343 = vlaneseq
        %v344 = vshrl.u32 %v343, 7
        %v345 = vsub.s32 0, %v344
        %v346 = vrot.slane %v341, %v345
        %v349 = vsel %vm322, %v336, 0
        %351 = vmatprep.subr.mxu0 0.0
        %352 = vmatpush1.msra.mxu0 %v337
        %353 = vmatprep.subr.mxu0 0.0
        %354 = vmatpush1.msra.mxu0 %v338
        %355 = vmatprep.subr.mxu0 0.0
        %356 = vmatpush1.msra.mxu0 %v339
        %357 = vmatprep.subr.mxu0 0.0
        %358 = vmatpush1.msra.mxu0 %v340
        %359 = vmatprep.subr.mxu0 0.0
        %360 = vmatpush1.msra.mxu0 0.0
        %361 = vmatprep.subr.mxu0 0.0
        %362 = vmatpush1.msra.mxu0 0.0
        %363 = vmatprep.subr.mxu0 0.0
        %364 = vmatpush1.msra.mxu0 0.0
        %365 = vmatprep.subr.mxu0 0.0
        %366 = vmatpush1.msra.mxu0 0.0
        %367 = vmatprep.subr.mxu0 0.0
        %368 = vmatpush1.msra.mxu0 0.0
        %369 = vmatprep.subr.mxu0 0.0
        %370 = vmatpush1.msra.mxu0 0.0
        %371 = vmatprep.subr.mxu0 0.0
        %372 = vmatpush1.msra.mxu0 0.0
        %373 = vmatprep.subr.mxu0 0.0
        %374 = vmatpush1.msra.mxu0 0.0
        %375 = vmatprep.subr.mxu0 0.0
        %376 = vmatpush1.msra.mxu0 0.0
        %377 = vmatprep.subr.mxu0 0.0
        %378 = vmatpush1.msra.mxu0 0.0
        %379 = vmatprep.subr.mxu0 0.0
        %380 = vmatpush1.msra.mxu0 0.0
        %381 = vmatprep.subr.mxu0 0.0
        %382 = vmatpush1.msra.mxu0 0.0
        %383 = vmatprep.subr.mxu0 0.0
        %384 = vmatpush1.msra.mxu0 0.0
        %385 = vmatprep.subr.mxu0 0.0
        %386 = vmatpush1.msra.mxu0 0.0
        %387 = vmatprep.subr.mxu0 0.0
        %388 = vmatpush1.msra.mxu0 0.0
        %389 = vmatprep.subr.mxu0 0.0
        %390 = vmatpush1.msra.mxu0 0.0
        %391 = vmatprep.subr.mxu0 0.0
        %392 = vmatpush1.msra.mxu0 0.0
        %393 = vmatprep.subr.mxu0 0.0
        %394 = vmatpush1.msra.mxu0 0.0
        %395 = vmatprep.subr.mxu0 0.0
        %396 = vmatpush1.msra.mxu0 0.0
        %397 = vmatprep.subr.mxu0 0.0
        %398 = vmatpush1.msra.mxu0 0.0
        %399 = vmatprep.subr.mxu0 0.0
        %400 = vmatpush1.msra.mxu0 0.0
        %401 = vmatprep.subr.mxu0 0.0
        %402 = vmatpush1.msra.mxu0 0.0
        %403 = vmatprep.subr.mxu0 0.0
        %404 = vmatpush1.msra.mxu0 0.0
        %405 = vmatprep.subr.mxu0 0.0
        %406 = vmatpush1.msra.mxu0 0.0
        %407 = vmatprep.subr.mxu0 0.0
        %408 = vmatpush1.msra.mxu0 0.0
        %409 = vmatprep.subr.mxu0 0.0
        %410 = vmatpush1.msra.mxu0 0.0
        %411 = vmatprep.subr.mxu0 0.0
        %412 = vmatpush1.msra.mxu0 0.0
        %413 = vmatprep.subr.mxu0 0.0
        %414 = vmatpush1.msra.mxu0 0.0
        %415 = vmatprep.mubr.f32.mxu0 0.0
        %416 = vmatmul.mubr.f32.gmra.mrb[0].mxu0 %v349
        %v417 = vpop.f32.mrb[0].mxu0
        %v418 = vadd.f32 %v346, %v417
        %v419 = vpop.f32.mrb[0].mxu0
        %420 = vdwg.mxu0
        %v421 = vmul.f32 %v418, 0.70710677
        %v422 = verf.f32.pop %v421
        %v423 = vadd.f32 %v422, 1.0
        %v424 = vld [vmem:[%s4] sm:$0x1]
        %v426 = vlaneseq
        %v427 = vshrl.u32 %v426, 7
        %v428 = vsub.s32 0, %v427
        %v429 = vrot.slane %v424, %v428
        %v431 = vmul.f32 %v418, %v429
        %v432 = vmul.f32 %v431, %v423
        %v433 = vsel %vm322, %v432, 0.0
        %434 = vadd.xlane.f32.xlu0 %v433
        %v435 = vpop.xlane.xlu0 %434
        %s436 = sld [smem:[#allocation2]]
        %v437 = vstv %s436
        %v438 = vadd.f32 %v435, %v437
        %439 = vxpose.xlu0.b32.start [1/16] %v438, 128
        %440 = vxpose.xlu0.b32.cont [2/16] 0.0, 128
        %441 = vxpose.xlu0.b32.cont [3/16] 0.0, 128
        %442 = vxpose.xlu0.b32.cont [4/16] 0.0, 128
        %443 = vxpose.xlu0.b32.cont [5/16] 0.0, 128
        %444 = vxpose.xlu0.b32.cont [6/16] 0.0, 128
        %445 = vxpose.xlu0.b32.cont [7/16] 0.0, 128
        %446 = vxpose.xlu0.b32.cont [8/16] 0.0, 128
        %447 = vxpose.xlu0.b32.cont [9/16] 0.0, 128
        %448 = vxpose.xlu0.b32.cont [10/16] 0.0, 128
        %449 = vxpose.xlu0.b32.cont [11/16] 0.0, 128
        %450 = vxpose.xlu0.b32.cont [12/16] 0.0, 128
        %451 = vxpose.xlu0.b32.cont [13/16] 0.0, 128
        %452 = vxpose.xlu0.b32.cont [14/16] 0.0, 128
        %453 = vxpose.xlu0.b32.cont [15/16] 0.0, 128
        %454 = vxpose.xlu0.b32.end [16/16] 0.0, 128
        %v455 = vpop.trf.xlu0
        %v456 = vpop.trf.xlu0
        %v457 = vpop.trf.xlu0
        %v458 = vpop.trf.xlu0
        %v459 = vpop.trf.xlu0
        %v460 = vpop.trf.xlu0
        %v461 = vpop.trf.xlu0
        %v462 = vpop.trf.xlu0
        %v463 = vpop.trf.xlu0
        %v464 = vpop.trf.xlu0
        %v465 = vpop.trf.xlu0
        %v466 = vpop.trf.xlu0
        %v467 = vpop.trf.xlu0
        %v468 = vpop.trf.xlu0
        %v469 = vpop.trf.xlu0
        %v470 = vpop.trf.xlu0
        %vm471 = vcmask 57344
        %472 = vst.msk [vmem:[%s309] sm:$0x1] %vm471, %v455
        %s473 = sand.u32 %s185, 1
        %s474 = scalar_lea.sflag [#allocation5], %s473
        %s475 = sand.u32 %s185, 1
        %s476 = scalar_lea.vmem [#allocation8], %s475
        // Predicated region
        $region53: #{tpu_custom_call.1} parent=43 // pred_check
          %p477 = pneg %p195
        $region54: #{tpu_custom_call.1} parent=43 // pred_check_branch
          %479 = sbr.rel (%p477) target = $region56
        $region55: #{tpu_custom_call.1} parent=43 // pred_region
          %s481 = ssub.s32 16, 16
          %482 = vsyncadd %s474, %s481
          %s483 = sadd.s32 %s30, %s29
          %s484 = smul.addr %s483, 16
          %s485 = scalar_lea.hbm %s6, %s484
          %s487 = sshll.u32 %s476, 4
          %s488 = int_to_ptr.vmem [resolvable:$true] %s487
          %490 = dma.vmem_to_hbm [thread:$0]  %s488, 16, %s485, %s474
        $region56: #{tpu_custom_call.1} parent=43 // pred_fallthru
          _
      $region44: #{tpu_custom_call.1} parent=5 // pred_fallthru
        _
      %p491 = scmp.le.s32.totalorder 2, %s20
      // Predicated region
      $region57: #{tpu_custom_call.1} parent=5 // pred_check
        %p492 = pneg %p491
      $region58: #{tpu_custom_call.1} parent=5 // pred_check_branch
        %494 = sbr.rel (%p492) target = $region60
      $region59: #{tpu_custom_call.1} parent=5 // pred_region
        %s495 = ssub.s32 %s20, 2
        // Predicated region
        $region61: #{tpu_custom_call.1} parent=59 // pred_check
          %p496 = pneg %p201
        $region62: #{tpu_custom_call.1} parent=59 // pred_check_branch
          %498 = sbr.rel (%p496) target = $region64
        $region63: #{tpu_custom_call.1} parent=59 // pred_region
          %s499 = sand.u32 %s186, 1
          %s500 = scalar_lea.sflag [#allocation5], %s499
          %s501 = sand.u32 %s186, 1
          %s502 = scalar_lea.vmem [#allocation8], %s501
          %503 = dma.done %s500, 16
        $region64: #{tpu_custom_call.1} parent=59 // pred_fallthru
          _
      $region60: #{tpu_custom_call.1} parent=5 // pred_fallthru
        _
    $region6: #{tpu_custom_call.1} parent=1 // loop_footer
      %s24 = sadd.s32 1, %s20
    $region7: #{tpu_custom_call.1} parent=1 // loop_footer_branch
      %19 = sbr.rel target = $region3
    $region8: #{tpu_custom_call.1} parent=1 // loop_exit
      _
    %504 = vsyncpa [#allocation4], 1
    %s505 = scalar_lea.sflag [#allocation4], 1
    %506 = vsyncpa %s505, 1
    %507 = vsyncpa [#allocation7], 1
    %508 = vsyncpa [#allocation5], 1
    %s509 = scalar_lea.sflag [#allocation5], 1
    %510 = vsyncpa %s509, 1

</llo_original>
